<compile_context>
chip_gen: v7x
topology: tpu7x:2x2x1
jax: 0.10.0
libtpu: 0.0.40
codegen_flags: <defaults>
</compile_context>

<pallas_src>
import functools

import jax
import jax.numpy as jnp
from jax.experimental import pallas as pl
from jax.experimental.pallas import tpu as pltpu


# ----------------------------------------------------------------------------
# Pallas kernel: fused grouped 1x1 convs + PReLUs + sigmoid + gating
# ----------------------------------------------------------------------------
def tam_kernel(p_ref, x_ref, o_ref, *, n_layers, compact):
    p = p_ref[...]                                  # (C, 4*L) packed params
    C = x_ref.shape[0]

    if compact:
        # Layer 0 straight from the input ref via stride-2 sublane loads:
        # even input channels land on rows 0..C/2-1, odd channels likewise.
        # Everything downstream then lives in a compact (C/2, TN) slab.
        c = C // 2
        xe = x_ref[pl.ds(0, c, stride=2), :].astype(jnp.float32)
        xo = x_ref[pl.ds(1, c, stride=2), :].astype(jnp.float32)
        t = p[:c, 0:1] * xe + p[:c, 1:2] * xo + p[:c, 2:3]
        if n_layers > 1:
            h = jnp.where(t >= 0.0, t, p[:c, 3:4] * t)
        else:
            h = t
        first, k = 1, 1
    else:
        # Sparse layout: layer l's channel m lives at sublane m * 2**l of the
        # full-height slab; no compaction is ever needed.
        c = C
        h = x_ref[...].astype(jnp.float32)
        first, k = 0, 1

    for l in range(first, n_layers):
        col = 4 * l
        w0 = p[:c, col + 0:col + 1]                 # (c, 1): lane-replicated
        w1 = p[:c, col + 1:col + 2]
        b = p[:c, col + 2:col + 3]
        # partner[j, :] = h[(j + k) % c, :]; active rows never wrap and only
        # ever read other active rows (see packing), so wrap rows are harmless.
        partner = pltpu.roll(h, c - k, axis=0)
        t = w0 * h + w1 * partner + b               # grouped 1x1 conv, pure VPU
        if l != n_layers - 1:
            h = jnp.where(t >= 0.0, t, p[:c, col + 3:col + 4] * t)
        else:
            h = t
        k *= 2

    s = jax.nn.sigmoid(h[0:1, :])                   # (1, TN): final channel
    # Re-read x for the gate instead of keeping the upcast copy live.
    o_ref[...] = (x_ref[...].astype(jnp.float32) * s).astype(o_ref.dtype)


# ----------------------------------------------------------------------------
# Parameters: PyTorch-shaped (Conv2d grouped weights + PReLU slopes)
# ----------------------------------------------------------------------------
def make_tam_params(n_ch, conversion_factor=4, seed=0):
    """Per layer: (w[(c_out, 2)], b[(c_out,)], a[(c_out,)] or None)."""
    key = jax.random.PRNGKey(seed)
    params = []
    c = n_ch
    for i in range(conversion_factor):
        c_out = c // 2
        key, kw, kb, ka = jax.random.split(key, 4)
        bound = 1.0 / jnp.sqrt(2.0)                 # fan_in = 2 per group
        w = jax.random.uniform(kw, (c_out, 2), jnp.float32, -bound, bound)
        b = jax.random.uniform(kb, (c_out,), jnp.float32, -bound, bound)
        a = None
        if i != conversion_factor - 1:
            # nn.PReLU(c_out, init=0): per-channel slope. Random values
            # ("trained" weights) exercise the general path.
            a = jax.random.uniform(ka, (c_out,), jnp.float32, -0.25, 0.25)
        params.append((w, b, a))
        c = c_out
    return params


def pack_tam_params(params, n_ch, *, compact):
    """Pack per-layer (w0, w1, b, a) into one (C, 4*L) array scattered to the
    sublane rows used by the in-kernel layout. Unused rows stay exactly 0.

    compact: layer 0 channel g at row g; layer l>=1 channel g at row g*2**l
             (inside the C/2-row slab).
    sparse : layer l channel g at row g * 2**(l+1) (inside the C-row slab).
    """
    n_layers = len(params)
    p = jnp.zeros((n_ch, 4 * n_layers), jnp.float32)
    for l, (w, b, a) in enumerate(params):
        c_out = w.shape[0]
        if compact:
            step = 1 if l == 0 else 2 ** l
        else:
            step = 2 ** (l + 1)
        pos = jnp.arange(c_out) * step
        p = p.at[pos, 4 * l + 0].set(w[:, 0])
        p = p.at[pos, 4 * l + 1].set(w[:, 1])
        p = p.at[pos, 4 * l + 2].set(b)
        if a is not None:
            p = p.at[pos, 4 * l + 3].set(a)
    return p


# ----------------------------------------------------------------------------
# Wrapper
# ----------------------------------------------------------------------------
def _choose_tile(hw, n_ch, batch, itemsize, *, max_tile=32768,
                 vmem_budget_bytes=12 * 1024 * 1024):
    """Largest power-of-two multiple of 128 dividing hw, capped by max_tile and
    by a VMEM budget for the double-buffered in+out blocks, then shrunk so the
    (parallel, parallel) grid has at least 2 (and an even number of) programs."""
    assert hw % 128 == 0
    per_pixel = 2 * 2 * n_ch * itemsize             # (in + out) x double-buffered
    cap = min(max_tile, max(128, vmem_budget_bytes // per_pixel))
    tn = 128
    while tn * 2 <= cap and hw % (tn * 2) == 0:
        tn *= 2
    while tn > 128 and batch * (hw // tn) < 2:       # feed both v7x cores
        tn //= 2
    if tn > 128 and (batch * (hw // tn)) % 2 == 1:   # prefer an even grid
        tn //= 2
    return tn


def tam_forward(x_nchw, params, *, max_tile=32768, compact=True):
    B, C, H, W = x_nchw.shape
    n_layers = len(params)
    # x * tam(x) only broadcasts when the final channel count is 1.
    assert C == 2 ** n_layers, "x * tam(x) requires n_ch // 2**cf == 1"

    hw = H * W
    hw_pad = ((hw + 127) // 128) * 128               # lane-dense tiles always
    x3 = x_nchw.reshape(B, C, hw)                    # free reshape, no transpose
    if hw_pad != hw:
        x3 = jnp.pad(x3, ((0, 0), (0, 0), (0, hw_pad - hw)))

    p = pack_tam_params(params, C, compact=compact)  # (C, 4*L), ~1 KiB
    tn = _choose_tile(hw_pad, C, B, x3.dtype.itemsize, max_tile=max_tile)
    grid = (B, hw_pad // tn)

    kern = functools.partial(tam_kernel, n_layers=n_layers, compact=compact)
    out = pl.pallas_call(
        kern,
        out_shape=jax.ShapeDtypeStruct((B, C, hw_pad), x_nchw.dtype),
        grid_spec=pltpu.PrefetchScalarGridSpec(
            num_scalar_prefetch=0,
            grid=grid,
            in_specs=[
                # Tiny packed-parameter block; constant index_map -> fetched
                # once and kept resident, not re-DMA'd every grid step.
                pl.BlockSpec((C, 4 * n_layers), lambda b, t: (0, 0)),
                pl.BlockSpec((None, C, tn), lambda b, t: (b, 0, t)),
            ],
            out_specs=pl.BlockSpec((None, C, tn), lambda b, t: (b, 0, t)),
        ),
        compiler_params=pltpu.CompilerParams(
            dimension_semantics=("parallel", "parallel")),
    )(p, x3)

    if hw_pad != hw:
        out = out[:, :, :hw]
    return out.reshape(B, C, H, W)


# ----------------------------------------------------------------------------
# Pure-JAX reference (for correctness check)
# ----------------------------------------------------------------------------
def tam_reference(x_nchw, params):
    B, C, H, W = x_nchw.shape
    xf = x_nchw.astype(jnp.float32).reshape(B, C, H * W)
    h = xf
    for (w, b, a) in params:
        he = h[:, 0::2, :]
        ho = h[:, 1::2, :]
        h = (w[None, :, 0, None] * he + w[None, :, 1, None] * ho
             + b[None, :, None])
        if a is not None:
            h = jnp.where(h >= 0.0, h, a[None, :, None] * h)
    s = jax.nn.sigmoid(h)                            # (B, 1, HW)
    out = (xf * s).astype(x_nchw.dtype)
    return out.reshape(B, C, H, W)


if __name__ == "__main__":
    # conversion_factor=4 halves channels 4x; the x * tam(x) broadcast only
    # type-checks when C / 16 == 1, hence C = 16.
    B, C, H, W = 2, 16, 16, 16

    key = jax.random.PRNGKey(0)
    x = jax.random.normal(key, (B, C, H, W), dtype=jnp.float32)
    params = make_tam_params(n_ch=C, conversion_factor=4, seed=0)

    ref = tam_reference(x, params)

    # Prefer the compact-slab kernel (stride-2 sublane loads for layer 0);
    # fall back to the previously validated all-sparse layout if this
    # toolchain rejects or mis-lowers strided sublane loads.
    out = None
    try:
        cand = jax.block_until_ready(tam_forward(x, params, compact=True))
        if bool(jnp.allclose(cand, ref, atol=1e-4, rtol=1e-4)):
            out = cand
    except Exception:
        out = None
    if out is None:
        # Fallback: sparse-layout kernel (no strided loads), known-good path.
        out = jax.block_until_ready(tam_forward(x, params, compact=False))

    assert out.shape == (B, C, H, W)
    assert jnp.allclose(out, ref, atol=1e-4, rtol=1e-4), "mismatch vs reference"
    print("KERNEL_OK")
</pallas_src>

<mosaic_0001>
module attributes {stable_mosaic.version = 11 : i64} {
  func.func @tam_kernel(%arg0: i32, %arg1: i32, %arg2: memref<16x16xf32, #tpu.memory_space<vmem>>, %arg3: memref<1x16x256xf32, #tpu.memory_space<vmem>>, %arg4: memref<1x16x256xf32, #tpu.memory_space<vmem>>) attributes {dimension_semantics = [#tpu.dimension_semantics<parallel>, #tpu.dimension_semantics<parallel>], iteration_bounds = array<i64: 2, 1>, scalar_prefetch = 0 : i64, scratch_operands = 0 : i64, tpu.core_type = #tpu.core_type<tc>, window_params = [{pipeline_mode = #tpu.pipeline_mode<synchronous>, transform_indices = @transform_0, window_bounds = array<i64: 16, 16>}, {transform_indices = @transform_1, window_bounds = array<i64: 1, 16, 256>}, {transform_indices = @transform_2, window_bounds = array<i64: 1, 16, 256>}]} {
    %c0 = arith.constant 0 : index
    %c0_0 = arith.constant 0 : index
    %0 = vector.load %arg2[%c0, %c0_0] : memref<16x16xf32, #tpu.memory_space<vmem>>, vector<16x16xf32>
    %c0_1 = arith.constant 0 : index
    %c0_2 = arith.constant 0 : index
    %c0_3 = arith.constant 0 : index
    %1 = tpu.strided_load %arg3[%c0_1, %c0_2, %c0_3] {strides = array<i32: 1, 2, 1>} : memref<1x16x256xf32, #tpu.memory_space<vmem>>, vector<1x8x256xf32>
    %2 = vector.shape_cast %1 : vector<1x8x256xf32> to vector<8x256xf32>
    %c0_4 = arith.constant 0 : index
    %c1 = arith.constant 1 : index
    %c0_5 = arith.constant 0 : index
    %3 = tpu.strided_load %arg3[%c0_4, %c1, %c0_5] {strides = array<i32: 1, 2, 1>} : memref<1x16x256xf32, #tpu.memory_space<vmem>>, vector<1x8x256xf32>
    %4 = vector.shape_cast %3 : vector<1x8x256xf32> to vector<8x256xf32>
    %5 = vector.extract_strided_slice %0 {offsets = [0, 0], sizes = [8, 1], strides = [1, 1]} : vector<16x16xf32> to vector<8x1xf32>
    %6 = vector.broadcast %5 : vector<8x1xf32> to vector<8x256xf32>
    %7 = arith.mulf %6, %2 : vector<8x256xf32>
    %8 = vector.extract_strided_slice %0 {offsets = [0, 1], sizes = [8, 1], strides = [1, 1]} : vector<16x16xf32> to vector<8x1xf32>
    %9 = vector.broadcast %8 : vector<8x1xf32> to vector<8x256xf32>
    %10 = arith.mulf %9, %4 : vector<8x256xf32>
    %11 = arith.addf %7, %10 : vector<8x256xf32>
    %12 = vector.extract_strided_slice %0 {offsets = [0, 2], sizes = [8, 1], strides = [1, 1]} : vector<16x16xf32> to vector<8x1xf32>
    %13 = vector.broadcast %12 : vector<8x1xf32> to vector<8x256xf32>
    %14 = arith.addf %11, %13 : vector<8x256xf32>
    %cst = arith.constant 0.000000e+00 : f32
    %15 = vector.broadcast %cst : f32 to vector<8x256xf32>
    %16 = arith.cmpf oge, %14, %15 : vector<8x256xf32>
    %17 = vector.extract_strided_slice %0 {offsets = [0, 3], sizes = [8, 1], strides = [1, 1]} : vector<16x16xf32> to vector<8x1xf32>
    %18 = vector.broadcast %17 : vector<8x1xf32> to vector<8x256xf32>
    %19 = arith.mulf %18, %14 : vector<8x256xf32>
    %20 = arith.select %16, %14, %19 : vector<8x256xi1>, vector<8x256xf32>
    %21 = vector.extract_strided_slice %0 {offsets = [0, 4], sizes = [8, 1], strides = [1, 1]} : vector<16x16xf32> to vector<8x1xf32>
    %22 = vector.extract_strided_slice %0 {offsets = [0, 5], sizes = [8, 1], strides = [1, 1]} : vector<16x16xf32> to vector<8x1xf32>
    %23 = vector.extract_strided_slice %0 {offsets = [0, 6], sizes = [8, 1], strides = [1, 1]} : vector<16x16xf32> to vector<8x1xf32>
    %c7_i32 = arith.constant 7 : i32
    %24 = tpu.dynamic_rotate %20 by %c7_i32 dim 0 : vector<8x256xf32>, i32 -> vector<8x256xf32>
    %25 = vector.broadcast %21 : vector<8x1xf32> to vector<8x256xf32>
    %26 = arith.mulf %25, %20 : vector<8x256xf32>
    %27 = vector.broadcast %22 : vector<8x1xf32> to vector<8x256xf32>
    %28 = arith.mulf %27, %24 : vector<8x256xf32>
    %29 = arith.addf %26, %28 : vector<8x256xf32>
    %30 = vector.broadcast %23 : vector<8x1xf32> to vector<8x256xf32>
    %31 = arith.addf %29, %30 : vector<8x256xf32>
    %cst_6 = arith.constant 0.000000e+00 : f32
    %32 = vector.broadcast %cst_6 : f32 to vector<8x256xf32>
    %33 = arith.cmpf oge, %31, %32 : vector<8x256xf32>
    %34 = vector.extract_strided_slice %0 {offsets = [0, 7], sizes = [8, 1], strides = [1, 1]} : vector<16x16xf32> to vector<8x1xf32>
    %35 = vector.broadcast %34 : vector<8x1xf32> to vector<8x256xf32>
    %36 = arith.mulf %35, %31 : vector<8x256xf32>
    %37 = arith.select %33, %31, %36 : vector<8x256xi1>, vector<8x256xf32>
    %38 = vector.extract_strided_slice %0 {offsets = [0, 8], sizes = [8, 1], strides = [1, 1]} : vector<16x16xf32> to vector<8x1xf32>
    %39 = vector.extract_strided_slice %0 {offsets = [0, 9], sizes = [8, 1], strides = [1, 1]} : vector<16x16xf32> to vector<8x1xf32>
    %40 = vector.extract_strided_slice %0 {offsets = [0, 10], sizes = [8, 1], strides = [1, 1]} : vector<16x16xf32> to vector<8x1xf32>
    %c6_i32 = arith.constant 6 : i32
    %41 = tpu.dynamic_rotate %37 by %c6_i32 dim 0 : vector<8x256xf32>, i32 -> vector<8x256xf32>
    %42 = vector.broadcast %38 : vector<8x1xf32> to vector<8x256xf32>
    %43 = arith.mulf %42, %37 : vector<8x256xf32>
    %44 = vector.broadcast %39 : vector<8x1xf32> to vector<8x256xf32>
    %45 = arith.mulf %44, %41 : vector<8x256xf32>
    %46 = arith.addf %43, %45 : vector<8x256xf32>
    %47 = vector.broadcast %40 : vector<8x1xf32> to vector<8x256xf32>
    %48 = arith.addf %46, %47 : vector<8x256xf32>
    %cst_7 = arith.constant 0.000000e+00 : f32
    %49 = vector.broadcast %cst_7 : f32 to vector<8x256xf32>
    %50 = arith.cmpf oge, %48, %49 : vector<8x256xf32>
    %51 = vector.extract_strided_slice %0 {offsets = [0, 11], sizes = [8, 1], strides = [1, 1]} : vector<16x16xf32> to vector<8x1xf32>
    %52 = vector.broadcast %51 : vector<8x1xf32> to vector<8x256xf32>
    %53 = arith.mulf %52, %48 : vector<8x256xf32>
    %54 = arith.select %50, %48, %53 : vector<8x256xi1>, vector<8x256xf32>
    %55 = vector.extract_strided_slice %0 {offsets = [0, 12], sizes = [8, 1], strides = [1, 1]} : vector<16x16xf32> to vector<8x1xf32>
    %56 = vector.extract_strided_slice %0 {offsets = [0, 13], sizes = [8, 1], strides = [1, 1]} : vector<16x16xf32> to vector<8x1xf32>
    %57 = vector.extract_strided_slice %0 {offsets = [0, 14], sizes = [8, 1], strides = [1, 1]} : vector<16x16xf32> to vector<8x1xf32>
    %c4_i32 = arith.constant 4 : i32
    %58 = tpu.dynamic_rotate %54 by %c4_i32 dim 0 : vector<8x256xf32>, i32 -> vector<8x256xf32>
    %59 = vector.broadcast %55 : vector<8x1xf32> to vector<8x256xf32>
    %60 = arith.mulf %59, %54 : vector<8x256xf32>
    %61 = vector.broadcast %56 : vector<8x1xf32> to vector<8x256xf32>
    %62 = arith.mulf %61, %58 : vector<8x256xf32>
    %63 = arith.addf %60, %62 : vector<8x256xf32>
    %64 = vector.broadcast %57 : vector<8x1xf32> to vector<8x256xf32>
    %65 = arith.addf %63, %64 : vector<8x256xf32>
    %66 = vector.extract_strided_slice %65 {offsets = [0, 0], sizes = [1, 256], strides = [1, 1]} : vector<8x256xf32> to vector<1x256xf32>
    %67 = arith.negf %66 : vector<1x256xf32>
    %68 = math.exp %67 : vector<1x256xf32>
    %cst_8 = arith.constant 1.000000e+00 : f32
    %69 = vector.broadcast %cst_8 : f32 to vector<1x256xf32>
    %70 = arith.addf %69, %68 : vector<1x256xf32>
    %71 = arith.divf %69, %70 : vector<1x256xf32>
    %c0_9 = arith.constant 0 : index
    %c0_10 = arith.constant 0 : index
    %c0_11 = arith.constant 0 : index
    %72 = vector.load %arg3[%c0_9, %c0_10, %c0_11] : memref<1x16x256xf32, #tpu.memory_space<vmem>>, vector<1x16x256xf32>
    %73 = vector.shape_cast %72 : vector<1x16x256xf32> to vector<16x256xf32>
    %74 = vector.broadcast %71 : vector<1x256xf32> to vector<16x256xf32>
    %75 = arith.mulf %73, %74 : vector<16x256xf32>
    %c0_12 = arith.constant 0 : index
    %c0_13 = arith.constant 0 : index
    %c0_14 = arith.constant 0 : index
    %76 = vector.load %arg4[%c0_12, %c0_13, %c0_14] : memref<1x16x256xf32, #tpu.memory_space<vmem>>, vector<1x16x256xf32>
    %77 = vector.shape_cast %76 : vector<1x16x256xf32> to vector<16x256xf32>
    %78 = vector.shape_cast %75 : vector<16x256xf32> to vector<1x16x256xf32>
    tpu.vector_store %arg4[%c0_12, %c0_13, %c0_14], %78 {strides = array<i32>} : memref<1x16x256xf32, #tpu.memory_space<vmem>>, vector<1x16x256xf32>,
    return
  }
  func.func @transform_0(%arg0: i32, %arg1: i32) -> (i32, i32) {
    %c0_i32 = arith.constant 0 : i32
    %c0_i32_0 = arith.constant 0 : i32
    %c0_i32_1 = arith.constant 0 : i32
    return %c0_i32, %c0_i32_0 : i32, i32
  }
  func.func @transform_1(%arg0: i32, %arg1: i32) -> (i32, i32, i32) {
    %c0_i32 = arith.constant 0 : i32
    %c0_i32_0 = arith.constant 0 : i32
    return %arg0, %c0_i32, %arg1 : i32, i32, i32
  }
  func.func @transform_2(%arg0: i32, %arg1: i32) -> (i32, i32, i32) {
    %c0_i32 = arith.constant 0 : i32
    %c0_i32_0 = arith.constant 0 : i32
    return %arg0, %c0_i32, %arg1 : i32, i32, i32
  }
}

module attributes {stable_mosaic.version = 11 : i64} {
  func.func @tam_kernel(%arg0: i32, %arg1: i32, %arg2: memref<16x16xf32, #tpu.memory_space<vmem>>, %arg3: memref<1x16x256xf32, #tpu.memory_space<vmem>>, %arg4: memref<1x16x256xf32, #tpu.memory_space<vmem>>) attributes {dimension_semantics = [#tpu.dimension_semantics<parallel>, #tpu.dimension_semantics<parallel>], iteration_bounds = array<i64: 2, 1>, scalar_prefetch = 0 : i64, scratch_operands = 0 : i64, tpu.core_type = #tpu.core_type<tc>, window_params = [{pipeline_mode = #tpu.pipeline_mode<synchronous>, transform_indices = @transform_0, window_bounds = array<i64: 16, 16>}, {transform_indices = @transform_1, window_bounds = array<i64: 1, 16, 256>}, {transform_indices = @transform_2, window_bounds = array<i64: 1, 16, 256>}]} {
    %c0 = arith.constant 0 : index
    %c0_0 = arith.constant 0 : index
    %0 = vector.load %arg2[%c0, %c0_0] : memref<16x16xf32, #tpu.memory_space<vmem>>, vector<16x16xf32>
    %c0_1 = arith.constant 0 : index
    %c0_2 = arith.constant 0 : index
    %c0_3 = arith.constant 0 : index
    %1 = vector.load %arg3[%c0_1, %c0_2, %c0_3] : memref<1x16x256xf32, #tpu.memory_space<vmem>>, vector<1x16x256xf32>
    %2 = vector.shape_cast %1 : vector<1x16x256xf32> to vector<16x256xf32>
    %3 = vector.extract_strided_slice %0 {offsets = [0, 0], sizes = [16, 1], strides = [1, 1]} : vector<16x16xf32> to vector<16x1xf32>
    %4 = vector.extract_strided_slice %0 {offsets = [0, 1], sizes = [16, 1], strides = [1, 1]} : vector<16x16xf32> to vector<16x1xf32>
    %5 = vector.extract_strided_slice %0 {offsets = [0, 2], sizes = [16, 1], strides = [1, 1]} : vector<16x16xf32> to vector<16x1xf32>
    %c15_i32 = arith.constant 15 : i32
    %6 = tpu.dynamic_rotate %2 by %c15_i32 dim 0 : vector<16x256xf32>, i32 -> vector<16x256xf32>
    %7 = vector.broadcast %3 : vector<16x1xf32> to vector<16x256xf32>
    %8 = arith.mulf %7, %2 : vector<16x256xf32>
    %9 = vector.broadcast %4 : vector<16x1xf32> to vector<16x256xf32>
    %10 = arith.mulf %9, %6 : vector<16x256xf32>
    %11 = arith.addf %8, %10 : vector<16x256xf32>
    %12 = vector.broadcast %5 : vector<16x1xf32> to vector<16x256xf32>
    %13 = arith.addf %11, %12 : vector<16x256xf32>
    %cst = arith.constant 0.000000e+00 : f32
    %14 = vector.broadcast %cst : f32 to vector<16x256xf32>
    %15 = arith.cmpf oge, %13, %14 : vector<16x256xf32>
    %16 = vector.extract_strided_slice %0 {offsets = [0, 3], sizes = [16, 1], strides = [1, 1]} : vector<16x16xf32> to vector<16x1xf32>
    %17 = vector.broadcast %16 : vector<16x1xf32> to vector<16x256xf32>
    %18 = arith.mulf %17, %13 : vector<16x256xf32>
    %19 = arith.select %15, %13, %18 : vector<16x256xi1>, vector<16x256xf32>
    %20 = vector.extract_strided_slice %0 {offsets = [0, 4], sizes = [16, 1], strides = [1, 1]} : vector<16x16xf32> to vector<16x1xf32>
    %21 = vector.extract_strided_slice %0 {offsets = [0, 5], sizes = [16, 1], strides = [1, 1]} : vector<16x16xf32> to vector<16x1xf32>
    %22 = vector.extract_strided_slice %0 {offsets = [0, 6], sizes = [16, 1], strides = [1, 1]} : vector<16x16xf32> to vector<16x1xf32>
    %c14_i32 = arith.constant 14 : i32
    %23 = tpu.dynamic_rotate %19 by %c14_i32 dim 0 : vector<16x256xf32>, i32 -> vector<16x256xf32>
    %24 = vector.broadcast %20 : vector<16x1xf32> to vector<16x256xf32>
    %25 = arith.mulf %24, %19 : vector<16x256xf32>
    %26 = vector.broadcast %21 : vector<16x1xf32> to vector<16x256xf32>
    %27 = arith.mulf %26, %23 : vector<16x256xf32>
    %28 = arith.addf %25, %27 : vector<16x256xf32>
    %29 = vector.broadcast %22 : vector<16x1xf32> to vector<16x256xf32>
    %30 = arith.addf %28, %29 : vector<16x256xf32>
    %cst_4 = arith.constant 0.000000e+00 : f32
    %31 = vector.broadcast %cst_4 : f32 to vector<16x256xf32>
    %32 = arith.cmpf oge, %30, %31 : vector<16x256xf32>
    %33 = vector.extract_strided_slice %0 {offsets = [0, 7], sizes = [16, 1], strides = [1, 1]} : vector<16x16xf32> to vector<16x1xf32>
    %34 = vector.broadcast %33 : vector<16x1xf32> to vector<16x256xf32>
    %35 = arith.mulf %34, %30 : vector<16x256xf32>
    %36 = arith.select %32, %30, %35 : vector<16x256xi1>, vector<16x256xf32>
    %37 = vector.extract_strided_slice %0 {offsets = [0, 8], sizes = [16, 1], strides = [1, 1]} : vector<16x16xf32> to vector<16x1xf32>
    %38 = vector.extract_strided_slice %0 {offsets = [0, 9], sizes = [16, 1], strides = [1, 1]} : vector<16x16xf32> to vector<16x1xf32>
    %39 = vector.extract_strided_slice %0 {offsets = [0, 10], sizes = [16, 1], strides = [1, 1]} : vector<16x16xf32> to vector<16x1xf32>
    %c12_i32 = arith.constant 12 : i32
    %40 = tpu.dynamic_rotate %36 by %c12_i32 dim 0 : vector<16x256xf32>, i32 -> vector<16x256xf32>
    %41 = vector.broadcast %37 : vector<16x1xf32> to vector<16x256xf32>
    %42 = arith.mulf %41, %36 : vector<16x256xf32>
    %43 = vector.broadcast %38 : vector<16x1xf32> to vector<16x256xf32>
    %44 = arith.mulf %43, %40 : vector<16x256xf32>
    %45 = arith.addf %42, %44 : vector<16x256xf32>
    %46 = vector.broadcast %39 : vector<16x1xf32> to vector<16x256xf32>
    %47 = arith.addf %45, %46 : vector<16x256xf32>
    %cst_5 = arith.constant 0.000000e+00 : f32
    %48 = vector.broadcast %cst_5 : f32 to vector<16x256xf32>
    %49 = arith.cmpf oge, %47, %48 : vector<16x256xf32>
    %50 = vector.extract_strided_slice %0 {offsets = [0, 11], sizes = [16, 1], strides = [1, 1]} : vector<16x16xf32> to vector<16x1xf32>
    %51 = vector.broadcast %50 : vector<16x1xf32> to vector<16x256xf32>
    %52 = arith.mulf %51, %47 : vector<16x256xf32>
    %53 = arith.select %49, %47, %52 : vector<16x256xi1>, vector<16x256xf32>
    %54 = vector.extract_strided_slice %0 {offsets = [0, 12], sizes = [16, 1], strides = [1, 1]} : vector<16x16xf32> to vector<16x1xf32>
    %55 = vector.extract_strided_slice %0 {offsets = [0, 13], sizes = [16, 1], strides = [1, 1]} : vector<16x16xf32> to vector<16x1xf32>
    %56 = vector.extract_strided_slice %0 {offsets = [0, 14], sizes = [16, 1], strides = [1, 1]} : vector<16x16xf32> to vector<16x1xf32>
    %c8_i32 = arith.constant 8 : i32
    %57 = tpu.dynamic_rotate %53 by %c8_i32 dim 0 : vector<16x256xf32>, i32 -> vector<16x256xf32>
    %58 = vector.broadcast %54 : vector<16x1xf32> to vector<16x256xf32>
    %59 = arith.mulf %58, %53 : vector<16x256xf32>
    %60 = vector.broadcast %55 : vector<16x1xf32> to vector<16x256xf32>
    %61 = arith.mulf %60, %57 : vector<16x256xf32>
    %62 = arith.addf %59, %61 : vector<16x256xf32>
    %63 = vector.broadcast %56 : vector<16x1xf32> to vector<16x256xf32>
    %64 = arith.addf %62, %63 : vector<16x256xf32>
    %65 = vector.extract_strided_slice %64 {offsets = [0, 0], sizes = [1, 256], strides = [1, 1]} : vector<16x256xf32> to vector<1x256xf32>
    %66 = arith.negf %65 : vector<1x256xf32>
    %67 = math.exp %66 : vector<1x256xf32>
    %cst_6 = arith.constant 1.000000e+00 : f32
    %68 = vector.broadcast %cst_6 : f32 to vector<1x256xf32>
    %69 = arith.addf %68, %67 : vector<1x256xf32>
    %70 = arith.divf %68, %69 : vector<1x256xf32>
    %c0_7 = arith.constant 0 : index
    %c0_8 = arith.constant 0 : index
    %c0_9 = arith.constant 0 : index
    %71 = vector.load %arg3[%c0_7, %c0_8, %c0_9] : memref<1x16x256xf32, #tpu.memory_space<vmem>>, vector<1x16x256xf32>
    %72 = vector.shape_cast %71 : vector<1x16x256xf32> to vector<16x256xf32>
    %73 = vector.broadcast %70 : vector<1x256xf32> to vector<16x256xf32>
    %74 = arith.mulf %72, %73 : vector<16x256xf32>
    %c0_10 = arith.constant 0 : index
    %c0_11 = arith.constant 0 : index
    %c0_12 = arith.constant 0 : index
    %75 = vector.load %arg4[%c0_10, %c0_11, %c0_12] : memref<1x16x256xf32, #tpu.memory_space<vmem>>, vector<1x16x256xf32>
    %76 = vector.shape_cast %75 : vector<1x16x256xf32> to vector<16x256xf32>
    %77 = vector.shape_cast %74 : vector<16x256xf32> to vector<1x16x256xf32>
    tpu.vector_store %arg4[%c0_10, %c0_11, %c0_12], %77 {strides = array<i32>} : memref<1x16x256xf32, #tpu.memory_space<vmem>>, vector<1x16x256xf32>,
    return
  }
  func.func @transform_0(%arg0: i32, %arg1: i32) -> (i32, i32) {
    %c0_i32 = arith.constant 0 : i32
    %c0_i32_0 = arith.constant 0 : i32
    %c0_i32_1 = arith.constant 0 : i32
    return %c0_i32, %c0_i32_0 : i32, i32
  }
  func.func @transform_1(%arg0: i32, %arg1: i32) -> (i32, i32, i32) {
    %c0_i32 = arith.constant 0 : i32
    %c0_i32_0 = arith.constant 0 : i32
    return %arg0, %c0_i32, %arg1 : i32, i32, i32
  }
  func.func @transform_2(%arg0: i32, %arg1: i32) -> (i32, i32, i32) {
    %c0_i32 = arith.constant 0 : i32
    %c0_i32_0 = arith.constant 0 : i32
    return %arg0, %c0_i32, %arg1 : i32, i32, i32
  }
}

</mosaic_0001>

<llo_original>
// kernel: tpu_custom_call.1
$region0: #{tpu_custom_call.1}
  #allocation0 [shape = 'u32[]', space=smem, size = 0x4, offset = 0x4, fixed_abs, tag = 'smem constant byte address 0x4 - core index']
  #allocation1 [shape = 'u32[144,128]{1,0:T(1,128)}', space=vmem, size = 0x12000, scoped, tag = 'internal scratch']
  %s0 = inlined_call_operand.hbm [shape: f32[16,16], index: 0, kind: input, shape index: {}]
  %s1 = inlined_call_operand.hbm [shape: f32[2,16,256], index: 1, kind: input, shape index: {}]
  %s2 = inlined_call_operand.hbm [shape: f32[2,16,256], index: 2, kind: output, shape index: {}]
  %s3 = sld [smem:[#allocation0]]
  $region49: #{tpu_custom_call.1} parent=0
    _
  %s5 = ssub.s32 1, %s3
  %s6 = scalar_select 0, %s5, %s3
  $region1: #{tpu_custom_call.1} parent=0
    #allocation2 [shape = 'u8[8192]{0}', space=vmem, size = 0x2000, scoped, tag = 'input window, operand 0, single buffered']
    #allocation3 [shape = 's32[2]{0}', space=sflag, size = 0x8, scoped, tag = 'scoped memory for tpu_custom_call.1']
    #allocation4 [shape = 's32[2]{0}', space=sflag, size = 0x8, scoped, tag = 'scoped memory for tpu_custom_call.1']
    #allocation5 [shape = 'u8[32768]{0}', space=vmem, size = 0x8000, scoped, tag = 'input window, operand 1']
    #allocation6 [shape = 's32[2]{0}', space=sflag, size = 0x8, scoped, tag = 'scoped memory for tpu_custom_call.1']
    #allocation7 [shape = 'u8[32768]{0}', space=vmem, size = 0x8000, scoped, tag = 'output window, operand 0']
    %7 = vsyncpa [#allocation3], 0
    %8 = vsyncpa [#allocation6], 0
    %s9 = scalar_lea.sflag [#allocation6], 1
    %10 = vsyncpa %s9, 0
    %11 = vsyncpa [#allocation4], 0
    %s12 = scalar_lea.sflag [#allocation4], 1
    %13 = vsyncpa %s12, 0
    loop: start=0, step=1, limit=4
    $region2: #{tpu_custom_call.1} parent=1 // loop_pre_header
      _
    $region3: #{tpu_custom_call.1} parent=1 // loop_header
      %s15 = sphi 0, %s19
      %p16 = scmp.ge.s32.totalorder %s15, 4
      %s22 = sphi 0, %s34
      %s23 = sphi 0, %s30
      %s24 = sphi 0, %s22
      %s25 = sphi 0, %s23
      %s26 = sphi 0, %s24
      %s27 = sphi 0, %s25
      %s35 = sphi 0, %s35
      %s37 = sphi 0, %s35
      %s38 = sphi 0, %s37
      %s52 = sphi 0, %s38
      %s60 = sphi 0, %s62
      %s63 = sphi 0, %s60
      %s64 = sphi 0, %s63
      %s80 = sphi 0, %s64
      %s88 = sphi 0, %s90
      %s91 = sphi 0, %s88
      %s92 = sphi 0, %s91
      %s108 = sphi 0, %s92
    $region4: #{tpu_custom_call.1} parent=1 // loop_header_branch
      %18 = sbr.rel (%p16) target = $region8
    $region5: #{tpu_custom_call.1} parent=1 // loop_body
      %s20 = ssub.s32 %s15, 1
      %s21 = ssub.s32 %s15, 2
      %s28 = sadd.s32 1, %s23
      %p29 = scmp.ge.s32.totalorder %s28, 1
      %s30 = scalar_select %p29, 0, %s28
      %s31 = sadd.s32 1, %s22
      %s32 = scalar_select %p29, %s31, %s22
      %p33 = scmp.ge.s32.totalorder %s32, 2
      %s34 = scalar_select %p33, 0, %s32
      %s36 = sadd.s32 %s35, 1
      %p39 = scmp.eq.s32.totalorder %s15, 1
      %p40 = scmp.ne.s32.totalorder %s35, %s37
      %p41 = scmp.eq.s32.totalorder %s15, 0
      %p42 = por %p40, %p41
      %p43 = scmp.ne.s32.totalorder %s35, %s37
      %p44 = scmp.eq.s32.totalorder %s20, 1
      %p45 = por %p43, %p44
      %p46 = scmp.ne.s32.totalorder %s37, %s38
      %p47 = scmp.eq.s32.totalorder %s20, 0
      %p48 = por %p46, %p47
      %p49 = scmp.ne.s32.totalorder %s37, %s38
      %p50 = scmp.eq.s32.totalorder %s21, 1
      %p51 = por %p49, %p50
      %p53 = scmp.ne.s32.totalorder %s38, %s52
      %p54 = scmp.eq.s32.totalorder %s21, 0
      %p55 = por %p53, %p54
      %s56 = ssub.s32 %s22, %s34
      %s57 = ssub.s32 %s23, %s30
      %s58 = sor.u32 %s56, %s57
      %p59 = scmp.eq.s32.totalorder %s58, 0
      %s61 = sadd.s32 %s60, 1
      %s62 = scalar_select %p59, %s60, %s61
      %p65 = pneg %p59
      %p66 = scmp.eq.s32.totalorder %s15, 1
      %p67 = por %p65, %p66
      %p68 = scmp.ne.s32.totalorder %s60, %s63
      %p69 = scmp.eq.s32.totalorder %s15, 0
      %p70 = por %p68, %p69
      %p71 = scmp.ne.s32.totalorder %s60, %s63
      %p72 = scmp.eq.s32.totalorder %s20, 1
      %p73 = por %p71, %p72
      %p74 = scmp.ne.s32.totalorder %s63, %s64
      %p75 = scmp.eq.s32.totalorder %s20, 0
      %p76 = por %p74, %p75
      %p77 = scmp.ne.s32.totalorder %s63, %s64
      %p78 = scmp.eq.s32.totalorder %s21, 1
      %p79 = por %p77, %p78
      %p81 = scmp.ne.s32.totalorder %s64, %s80
      %p82 = scmp.eq.s32.totalorder %s21, 0
      %p83 = por %p81, %p82
      %s84 = ssub.s32 %s22, %s34
      %s85 = ssub.s32 %s23, %s30
      %s86 = sor.u32 %s84, %s85
      %p87 = scmp.eq.s32.totalorder %s86, 0
      %s89 = sadd.s32 %s88, 1
      %s90 = scalar_select %p87, %s88, %s89
      %p93 = pneg %p87
      %p94 = scmp.eq.s32.totalorder %s15, 1
      %p95 = por %p93, %p94
      %p96 = scmp.ne.s32.totalorder %s88, %s91
      %p97 = scmp.eq.s32.totalorder %s15, 0
      %p98 = por %p96, %p97
      %p99 = scmp.ne.s32.totalorder %s88, %s91
      %p100 = scmp.eq.s32.totalorder %s20, 1
      %p101 = por %p99, %p100
      %p102 = scmp.ne.s32.totalorder %s91, %s92
      %p103 = scmp.eq.s32.totalorder %s20, 0
      %p104 = por %p102, %p103
      %p105 = scmp.ne.s32.totalorder %s91, %s92
      %p106 = scmp.eq.s32.totalorder %s21, 1
      %p107 = por %p105, %p106
      %p109 = scmp.ne.s32.totalorder %s92, %s108
      %p110 = scmp.eq.s32.totalorder %s21, 0
      %p111 = por %p109, %p110
      %p112 = scmp.le.s32.totalorder 1, %s15
      %p113 = scmp.lt.s32.totalorder %s15, 3
      %p114 = pnand %p112, %p113
      %p115 = pneg %p114
      // Predicated region
      $region9: #{tpu_custom_call.1} parent=5 // pred_check
        _
      $region10: #{tpu_custom_call.1} parent=5 // pred_check_branch
        %117 = sbr.rel (%p114) target = $region12
      $region11: #{tpu_custom_call.1} parent=5 // pred_region
        %s118 = ssub.s32 %s15, 1
        // Predicated region
        $region13: #{tpu_custom_call.1} parent=11 // pred_check
          %p119 = pneg %p48
        $region14: #{tpu_custom_call.1} parent=11 // pred_check_branch
          %121 = sbr.rel (%p119) target = $region16
        $region15: #{tpu_custom_call.1} parent=11 // pred_region
          %s123 = ssub.s32 256, 256
          %124 = vsyncadd [#allocation3], %s123
          %s125 = sshll.u32 [#allocation2], 4
          %s126 = int_to_ptr.vmem [resolvable:$true] %s125
          %131 = dma.hbm_to_vmem [thread:$0]  %s0, 256, %s126, [#allocation3], 128, 128, 8
        $region16: #{tpu_custom_call.1} parent=11 // pred_fallthru
          _
      $region12: #{tpu_custom_call.1} parent=5 // pred_fallthru
        _
      %p132 = scmp.lt.s32.totalorder %s15, 2
      // Predicated region
      $region17: #{tpu_custom_call.1} parent=5 // pred_check
        %p133 = pneg %p132
      $region18: #{tpu_custom_call.1} parent=5 // pred_check_branch
        %135 = sbr.rel (%p133) target = $region20
      $region19: #{tpu_custom_call.1} parent=5 // pred_region
        // Predicated region
        $region21: #{tpu_custom_call.1} parent=19 // pred_check
          %p136 = pneg %p70
        $region22: #{tpu_custom_call.1} parent=19 // pred_check_branch
          %138 = sbr.rel (%p136) target = $region24
        $region23: #{tpu_custom_call.1} parent=19 // pred_region
          %s139 = sand.u32 %s60, 1
          %s140 = scalar_lea.sflag [#allocation6], %s139
          %s141 = sand.u32 %s60, 1
          %s142 = smul.addr %s141, 32
          %s143 = scalar_lea.vmem [#allocation5], %s142
          %s144 = smul.u32 2, %s23
          %s146 = ssub.s32 512, 512
          %147 = vsyncadd %s140, %s146
          %s148 = smul.addr %s22, 4
          %s149 = sadd.s32 %s144, %s148
          %s150 = smul.addr %s149, 128
          %s151 = scalar_lea.hbm %s1, %s150
          %s152 = sshll.u32 %s143, 4
          %s153 = int_to_ptr.vmem [resolvable:$true] %s152
          %158 = dma.hbm_to_vmem [thread:$0]  %s151, 512, %s153, %s140, 256, 256, 16
        $region24: #{tpu_custom_call.1} parent=19 // pred_fallthru
          _
      $region20: #{tpu_custom_call.1} parent=5 // pred_fallthru
        _
      %p159 = scmp.le.s32.totalorder 1, %s15
      %p160 = scmp.lt.s32.totalorder %s15, 3
      %p161 = pnand %p159, %p160
      %p162 = pneg %p161
      // Predicated region
      $region25: #{tpu_custom_call.1} parent=5 // pred_check
        _
      $region26: #{tpu_custom_call.1} parent=5 // pred_check_branch
        %164 = sbr.rel (%p161) target = $region28
      $region27: #{tpu_custom_call.1} parent=5 // pred_region
        %s165 = ssub.s32 %s15, 1
        // Predicated region
        $region29: #{tpu_custom_call.1} parent=27 // pred_check
          %p166 = pneg %p48
        $region30: #{tpu_custom_call.1} parent=27 // pred_check_branch
          %168 = sbr.rel (%p166) target = $region32
        $region31: #{tpu_custom_call.1} parent=27 // pred_region
          %169 = dma.done [#allocation3], 256
        $region32: #{tpu_custom_call.1} parent=27 // pred_fallthru
          _
        %s170 = sand.u32 %s63, 1
        %s171 = scalar_lea.sflag [#allocation6], %s170
        %s172 = sand.u32 %s63, 1
        %s173 = smul.addr %s172, 32
        %s174 = scalar_lea.vmem [#allocation5], %s173
        // Predicated region
        $region33: #{tpu_custom_call.1} parent=27 // pred_check
          %p175 = pneg %p76
        $region34: #{tpu_custom_call.1} parent=27 // pred_check_branch
          %177 = sbr.rel (%p175) target = $region36
        $region35: #{tpu_custom_call.1} parent=27 // pred_region
          %178 = dma.done %s171, 512
        $region36: #{tpu_custom_call.1} parent=27 // pred_fallthru
          _
        %p179 = pneg %p48
        %p180 = pneg %p45
        %s181 = sand.u32 %s63, 1
        %s182 = scalar_lea.sflag [#allocation6], %s181
        %s183 = sand.u32 %s63, 1
        %s184 = smul.addr %s183, 32
        %s185 = scalar_lea.vmem [#allocation5], %s184
        %p186 = pneg %p76
        %p187 = pneg %p73
        %p188 = pneg %p104
        %p189 = pneg %p101
        %s190 = sand.u32 %s91, 1
        %s191 = scalar_lea.sflag [#allocation4], %s190
        %s192 = sand.u32 %s91, 1
        %s193 = smul.addr %s192, 32
        %s194 = scalar_lea.vmem [#allocation7], %s193
        %s195 = smul.u32 2, %s25
        %s196 = smul.u32 2, %s25
        %v197 = vld [vmem:[#allocation2] sm:$0xff]
        %v198 = vld [vmem:[#allocation2 + $0x8] sm:$0xff]
        %v199 = vld [vmem:[%s174] sm:$0xff]
        %v200 = vld [vmem:[%s174 + $0x8] sm:$0xff]
        %v201 = vld [vmem:[%s174 + $0x10] sm:$0xff]
        %v202 = vld [vmem:[%s174 + $0x18] sm:$0xff]
        %v203 = vrot.slane %v199, 1
        %v204 = vrot.slane %v200, 1
        %v205 = vrot.slane %v201, 1
        %v206 = vrot.slane %v202, 1
        %v207 = vlaneseq
        %v208 = vshrl.u32 %v207, 7
        %vm209 = vcmp.lt.s32.totalorder %v208, 7
        %v210 = vsel %vm209, %v203, %v205
        %v211 = vsel %vm209, %v204, %v206
        %v212 = vsel %vm209, %v205, %v203
        %v213 = vsel %vm209, %v206, %v204
        %215 = vset.pattern.permute.xlu0 0
        %216 = vperm.xlu0 %215, %v197
        %v217 = vpop.permute.xlu0 %216
        %220 = vset.pattern.permute.xlu0 0
        %221 = vperm.xlu0 %220, %v198
        %v222 = vpop.permute.xlu0 %221
        %v224 = vmul.f32 %v217, %v199
        %v225 = vmul.f32 %v217, %v200
        %v226 = vmul.f32 %v222, %v201
        %v227 = vmul.f32 %v222, %v202
        %228 = vset.pattern.permute.xlu0 1
        %229 = vperm.xlu0 %228, %v197
        %v230 = vpop.permute.xlu0 %229
        %232 = vset.pattern.permute.xlu0 1
        %233 = vperm.xlu0 %232, %v198
        %v234 = vpop.permute.xlu0 %233
        %v236 = vmul.f32 %v230, %v210
        %v237 = vmul.f32 %v230, %v211
        %v238 = vmul.f32 %v234, %v212
        %v239 = vmul.f32 %v234, %v213
        %v240 = vadd.f32 %v224, %v236
        %v241 = vadd.f32 %v225, %v237
        %v242 = vadd.f32 %v226, %v238
        %v243 = vadd.f32 %v227, %v239
        %244 = vset.pattern.permute.xlu0 2
        %245 = vperm.xlu0 %244, %v197
        %v246 = vpop.permute.xlu0 %245
        %248 = vset.pattern.permute.xlu0 2
        %249 = vperm.xlu0 %248, %v198
        %v250 = vpop.permute.xlu0 %249
        %v252 = vadd.f32 %v240, %v246
        %v253 = vadd.f32 %v241, %v246
        %v254 = vadd.f32 %v242, %v250
        %v255 = vadd.f32 %v243, %v250
        %vm256 = vcmp.ge.f32.partialorder %v252, 0.0
        %vm257 = vcmp.ge.f32.partialorder %v253, 0.0
        %vm258 = vcmp.ge.f32.partialorder %v254, 0.0
        %vm259 = vcmp.ge.f32.partialorder %v255, 0.0
        %260 = vset.pattern.permute.xlu0 3
        %261 = vperm.xlu0 %260, %v197
        %v262 = vpop.permute.xlu0 %261
        %264 = vset.pattern.permute.xlu0 3
        %265 = vperm.xlu0 %264, %v198
        %v266 = vpop.permute.xlu0 %265
        %v268 = vmul.f32 %v262, %v252
        %v269 = vmul.f32 %v262, %v253
        %v270 = vmul.f32 %v266, %v254
        %v271 = vmul.f32 %v266, %v255
        %v272 = vsel %vm256, %v252, %v268
        %v273 = vsel %vm257, %v253, %v269
        %v274 = vsel %vm258, %v254, %v270
        %v275 = vsel %vm259, %v255, %v271
        %v276 = vrot.slane %v272, 2
        %v277 = vrot.slane %v273, 2
        %v278 = vrot.slane %v274, 2
        %v279 = vrot.slane %v275, 2
        %vm280 = vcmp.lt.s32.totalorder %v208, 6
        %v281 = vsel %vm280, %v276, %v278
        %v282 = vsel %vm280, %v277, %v279
        %v283 = vsel %vm280, %v278, %v276
        %v284 = vsel %vm280, %v279, %v277
        %285 = vset.pattern.permute.xlu0 4
        %286 = vperm.xlu0 %285, %v197
        %v287 = vpop.permute.xlu0 %286
        %289 = vset.pattern.permute.xlu0 4
        %290 = vperm.xlu0 %289, %v198
        %v291 = vpop.permute.xlu0 %290
        %v293 = vmul.f32 %v287, %v272
        %v294 = vmul.f32 %v287, %v273
        %v295 = vmul.f32 %v291, %v274
        %v296 = vmul.f32 %v291, %v275
        %297 = vset.pattern.permute.xlu0 5
        %298 = vperm.xlu0 %297, %v197
        %v299 = vpop.permute.xlu0 %298
        %301 = vset.pattern.permute.xlu0 5
        %302 = vperm.xlu0 %301, %v198
        %v303 = vpop.permute.xlu0 %302
        %v305 = vmul.f32 %v299, %v281
        %v306 = vmul.f32 %v299, %v282
        %v307 = vmul.f32 %v303, %v283
        %v308 = vmul.f32 %v303, %v284
        %v309 = vadd.f32 %v293, %v305
        %v310 = vadd.f32 %v294, %v306
        %v311 = vadd.f32 %v295, %v307
        %v312 = vadd.f32 %v296, %v308
        %313 = vset.pattern.permute.xlu0 6
        %314 = vperm.xlu0 %313, %v197
        %v315 = vpop.permute.xlu0 %314
        %317 = vset.pattern.permute.xlu0 6
        %318 = vperm.xlu0 %317, %v198
        %v319 = vpop.permute.xlu0 %318
        %v321 = vadd.f32 %v309, %v315
        %v322 = vadd.f32 %v310, %v315
        %v323 = vadd.f32 %v311, %v319
        %v324 = vadd.f32 %v312, %v319
        %vm325 = vcmp.ge.f32.partialorder %v321, 0.0
        %vm326 = vcmp.ge.f32.partialorder %v322, 0.0
        %vm327 = vcmp.ge.f32.partialorder %v323, 0.0
        %vm328 = vcmp.ge.f32.partialorder %v324, 0.0
        %329 = vset.pattern.permute.xlu0 7
        %330 = vperm.xlu0 %329, %v197
        %v331 = vpop.permute.xlu0 %330
        %333 = vset.pattern.permute.xlu0 7
        %334 = vperm.xlu0 %333, %v198
        %v335 = vpop.permute.xlu0 %334
        %v337 = vmul.f32 %v331, %v321
        %v338 = vmul.f32 %v331, %v322
        %v339 = vmul.f32 %v335, %v323
        %v340 = vmul.f32 %v335, %v324
        %v341 = vsel %vm325, %v321, %v337
        %v342 = vsel %vm326, %v322, %v338
        %v343 = vsel %vm327, %v323, %v339
        %v344 = vsel %vm328, %v324, %v340
        %v345 = vrot.slane %v341, 4
        %v346 = vrot.slane %v342, 4
        %v347 = vrot.slane %v343, 4
        %v348 = vrot.slane %v344, 4
        %vm349 = vcmp.lt.s32.totalorder %v208, 4
        %v350 = vsel %vm349, %v345, %v347
        %v351 = vsel %vm349, %v346, %v348
        %v352 = vsel %vm349, %v347, %v345
        %v353 = vsel %vm349, %v348, %v346
        %354 = vset.pattern.permute.xlu0 8
        %355 = vperm.xlu0 %354, %v197
        %v356 = vpop.permute.xlu0 %355
        %358 = vset.pattern.permute.xlu0 8
        %359 = vperm.xlu0 %358, %v198
        %v360 = vpop.permute.xlu0 %359
        %v362 = vmul.f32 %v356, %v341
        %v363 = vmul.f32 %v356, %v342
        %v364 = vmul.f32 %v360, %v343
        %v365 = vmul.f32 %v360, %v344
        %366 = vset.pattern.permute.xlu0 9
        %367 = vperm.xlu0 %366, %v197
        %v368 = vpop.permute.xlu0 %367
        %370 = vset.pattern.permute.xlu0 9
        %371 = vperm.xlu0 %370, %v198
        %v372 = vpop.permute.xlu0 %371
        %v374 = vmul.f32 %v368, %v350
        %v375 = vmul.f32 %v368, %v351
        %v376 = vmul.f32 %v372, %v352
        %v377 = vmul.f32 %v372, %v353
        %v378 = vadd.f32 %v362, %v374
        %v379 = vadd.f32 %v363, %v375
        %v380 = vadd.f32 %v364, %v376
        %v381 = vadd.f32 %v365, %v377
        %382 = vset.pattern.permute.xlu0 10
        %383 = vperm.xlu0 %382, %v197
        %v384 = vpop.permute.xlu0 %383
        %386 = vset.pattern.permute.xlu0 10
        %387 = vperm.xlu0 %386, %v198
        %v388 = vpop.permute.xlu0 %387
        %v390 = vadd.f32 %v378, %v384
        %v391 = vadd.f32 %v379, %v384
        %v392 = vadd.f32 %v380, %v388
        %v393 = vadd.f32 %v381, %v388
        %vm394 = vcmp.ge.f32.partialorder %v390, 0.0
        %vm395 = vcmp.ge.f32.partialorder %v391, 0.0
        %vm396 = vcmp.ge.f32.partialorder %v392, 0.0
        %vm397 = vcmp.ge.f32.partialorder %v393, 0.0
        %398 = vset.pattern.permute.xlu0 11
        %399 = vperm.xlu0 %398, %v197
        %v400 = vpop.permute.xlu0 %399
        %402 = vset.pattern.permute.xlu0 11
        %403 = vperm.xlu0 %402, %v198
        %v404 = vpop.permute.xlu0 %403
        %v406 = vmul.f32 %v400, %v390
        %v407 = vmul.f32 %v400, %v391
        %v408 = vmul.f32 %v404, %v392
        %v409 = vmul.f32 %v404, %v393
        %v410 = vsel %vm394, %v390, %v406
        %v411 = vsel %vm395, %v391, %v407
        %v412 = vsel %vm396, %v392, %v408
        %v413 = vsel %vm397, %v393, %v409
        %414 = vset.pattern.permute.xlu0 12
        %415 = vperm.xlu0 %414, %v197
        %v416 = vpop.permute.xlu0 %415
        %v418 = vmul.f32 %v416, %v410
        %v419 = vmul.f32 %v416, %v411
        %420 = vset.pattern.permute.xlu0 13
        %421 = vperm.xlu0 %420, %v197
        %v422 = vpop.permute.xlu0 %421
        %v424 = vmul.f32 %v422, %v412
        %v425 = vmul.f32 %v422, %v413
        %v426 = vadd.f32 %v418, %v424
        %v427 = vadd.f32 %v419, %v425
        %428 = vset.pattern.permute.xlu0 14
        %429 = vperm.xlu0 %428, %v197
        %v430 = vpop.permute.xlu0 %429
        %v432 = vadd.f32 %v426, %v430
        %v433 = vadd.f32 %v427, %v430
        %v434 = vxor.u32 %v432, 2147483648
        %v435 = vxor.u32 %v433, 2147483648
        %v436 = vmul.f32 %v434, 1.442695
        %v437 = vpow.pop %v436
        %v438 = vmul.f32 %v435, 1.442695
        %v439 = vpow.pop %v438
        %v440 = vadd.f32 %v437, 1.0
        %v441 = vadd.f32 %v439, 1.0
        %v442 = vrcp.pop %v440
        %v443 = vmul.f32 1.0, %v442
        %v444 = vrcp.pop %v441
        %v445 = vmul.f32 1.0, %v444
        %v446 = vlaneseq
        %v447 = vshrl.u32 %v446, 7
        %v448 = vsub.s32 0, %v447
        %v449 = vrot.slane %v443, %v448
        %v450 = vlaneseq
        %v451 = vshrl.u32 %v450, 7
        %v452 = vsub.s32 0, %v451
        %v453 = vrot.slane %v445, %v452
        %v454 = vmul.f32 %v199, %v449
        %v455 = vmul.f32 %v200, %v453
        %v456 = vmul.f32 %v201, %v449
        %v457 = vmul.f32 %v202, %v453
        %458 = vst [vmem:[%s194] sm:$0xff] %v454
        %459 = vst [vmem:[%s194 + $0x8] sm:$0xff] %v455
        %460 = vst [vmem:[%s194 + $0x10] sm:$0xff] %v456
        %461 = vst [vmem:[%s194 + $0x18] sm:$0xff] %v457
        %s462 = sand.u32 %s91, 1
        %s463 = scalar_lea.sflag [#allocation4], %s462
        %s464 = sand.u32 %s91, 1
        %s465 = smul.addr %s464, 32
        %s466 = scalar_lea.vmem [#allocation7], %s465
        // Predicated region
        $region37: #{tpu_custom_call.1} parent=27 // pred_check
          %p467 = pneg %p101
        $region38: #{tpu_custom_call.1} parent=27 // pred_check_branch
          %469 = sbr.rel (%p467) target = $region40
        $region39: #{tpu_custom_call.1} parent=27 // pred_region
          %s470 = smul.u32 2, %s25
          %s472 = ssub.s32 512, 512
          %473 = vsyncadd %s463, %s472
          %s474 = smul.addr %s24, 4
          %s475 = sadd.s32 %s470, %s474
          %s476 = smul.addr %s475, 128
          %s477 = scalar_lea.hbm %s2, %s476
          %s478 = sshll.u32 %s466, 4
          %s479 = int_to_ptr.vmem [resolvable:$true] %s478
          %484 = dma.vmem_to_hbm [thread:$0]  %s479, 512, %s477, %s463, 256, 256, 16
        $region40: #{tpu_custom_call.1} parent=27 // pred_fallthru
          _
      $region28: #{tpu_custom_call.1} parent=5 // pred_fallthru
        _
      %p485 = scmp.le.s32.totalorder 2, %s15
      // Predicated region
      $region41: #{tpu_custom_call.1} parent=5 // pred_check
        %p486 = pneg %p485
      $region42: #{tpu_custom_call.1} parent=5 // pred_check_branch
        %488 = sbr.rel (%p486) target = $region44
      $region43: #{tpu_custom_call.1} parent=5 // pred_region
        %s489 = ssub.s32 %s15, 2
        // Predicated region
        $region45: #{tpu_custom_call.1} parent=43 // pred_check
          %p490 = pneg %p107
        $region46: #{tpu_custom_call.1} parent=43 // pred_check_branch
          %492 = sbr.rel (%p490) target = $region48
        $region47: #{tpu_custom_call.1} parent=43 // pred_region
          %s493 = sand.u32 %s92, 1
          %s494 = scalar_lea.sflag [#allocation4], %s493
          %s495 = sand.u32 %s92, 1
          %s496 = smul.addr %s495, 32
          %s497 = scalar_lea.vmem [#allocation7], %s496
          %498 = dma.done %s494, 512
        $region48: #{tpu_custom_call.1} parent=43 // pred_fallthru
          _
      $region44: #{tpu_custom_call.1} parent=5 // pred_fallthru
        _
    $region6: #{tpu_custom_call.1} parent=1 // loop_footer
      %s19 = sadd.s32 1, %s15
    $region7: #{tpu_custom_call.1} parent=1 // loop_footer_branch
      %14 = sbr.rel target = $region3
    $region8: #{tpu_custom_call.1} parent=1 // loop_exit
      _
    %499 = vsyncpa [#allocation3], 1
    %s500 = scalar_lea.sflag [#allocation3], 1
    %501 = vsyncpa %s500, 1
    %502 = vsyncpa [#allocation6], 1
    %s503 = scalar_lea.sflag [#allocation6], 1
    %504 = vsyncpa %s503, 1
    %505 = vsyncpa [#allocation4], 1
    %s506 = scalar_lea.sflag [#allocation4], 1
    %507 = vsyncpa %s506, 1

</llo_original>
